<compile_context>
chip_gen: v6e
topology: v6e:2x2x1
jax: 0.10.0
libtpu: 0.0.40
codegen_flags: <defaults>
</compile_context>

<pallas_src>
import functools
import math

import jax
import jax.numpy as jnp
from jax.experimental import pallas as pl
from jax.experimental.pallas import tpu as pltpu


def _round_up(x, m):
    return ((x + m - 1) // m) * m


def mha_kernel(x_ref, wqkv_ref, bqkv_ref, wo_ref, bo_ref, o_ref,
               kv_ref, q_ref, ao_ref, *,
               n_heads, head_dim, seq_len, q_tile, compute_dtype, approx_recip):
    E = n_heads * head_dim
    S_pad = kv_ref.shape[0]
    qi = pl.program_id(1)

    # ---- K/V projection for the whole (padded) sequence, once per batch row
    # (qi == 0).  Result lives in a persistent compute-dtype VMEM slab reused
    # by every query tile of this row.  Casting right after the fp32 bias add
    # keeps only the narrow-dtype slab resident across the head loop.
    @pl.when(qi == 0)
    def _():
        kv = jnp.dot(x_ref[...], wqkv_ref[:, E:],
                     preferred_element_type=jnp.float32)           # (S_pad, 2E)
        kv_ref[...] = (kv + bqkv_ref[:, E:]).astype(compute_dtype)

    # ---- Q projection for this query tile; 1/sqrt(D) folded in once.
    row0 = pl.multiple_of(qi * q_tile, q_tile)
    xq = x_ref[pl.ds(row0, q_tile), :]                              # (tq, E)
    q = jnp.dot(xq, wqkv_ref[:, :E], preferred_element_type=jnp.float32)
    q = (q + bqkv_ref[:, :E]) * (1.0 / math.sqrt(head_dim))
    q_ref[...] = q.astype(compute_dtype)

    # ---- Per-head attention into the (tq, E) head-output slab.
    # Heads are statically unrolled: the per-head q/k/v column slices are on
    # the lane dimension and must be static for Mosaic.  Per-head live state
    # is confined to scratch refs, so only one head's (tq, S_pad) scores are
    # alive at a time.
    for h in range(n_heads):
        lo = h * head_dim
        qh = q_ref[:, lo:lo + head_dim]                             # (tq, D)
        kh = kv_ref[:, lo:lo + head_dim]                            # (S_pad, D)
        vh = kv_ref[:, E + lo:E + lo + head_dim]                    # (S_pad, D)

        # q_h @ k_h^T contracting the last dims (no transpose / XLU relayout).
        scores = jax.lax.dot_general(
            qh, kh, dimension_numbers=(((1,), (1,)), ((), ())),
            preferred_element_type=jnp.float32)                     # (tq, S_pad)
        if seq_len != S_pad:
            # Mask padded key columns so padding never affects the softmax.
            col = jax.lax.broadcasted_iota(jnp.int32, scores.shape, 1)
            scores = jnp.where(col < seq_len, scores, -jnp.inf)

        # Softmax in fp32 (max-subtracted).  approx reciprocal => rows sum to
        # ~1 within ~2^-12 relative error (fp32 path uses the exact divide).
        scores = scores - jnp.max(scores, axis=-1, keepdims=True)
        p = jnp.exp(scores)   # NOTE: bf16 exp is an option on v6e/v7x if EUP binds.
        p = p * pl.reciprocal(jnp.sum(p, axis=-1, keepdims=True),
                              approx=approx_recip)
        # TODO(synk): attention_dropout is identity in eval mode.

        head_out = jnp.dot(p.astype(compute_dtype), vh,
                           preferred_element_type=jnp.float32)      # (tq, D)
        ao_ref[:, lo:lo + head_dim] = head_out.astype(compute_dtype)

    # ---- Output projection as ONE (tq,E)@(E,E) matmul: full MXU depth (K=E)
    # instead of n_heads K=head_dim matmuls at ~25% MXU efficiency.
    out = jnp.dot(ao_ref[...], wo_ref[...],
                  preferred_element_type=jnp.float32) + bo_ref[...]
    # TODO(synk): projection_dropout is identity in eval mode.
    o_ref[...] = out.astype(o_ref.dtype)


def _physical_vmem_bytes():
    # Generation-aware: 128 MiB on v5e/v6e, 64 MiB per TensorCore on v7x.
    try:
        info = pltpu.get_tpu_info()
        for attr in ("vmem_capacity_bytes", "vmem_bytes", "vmem_size_bytes"):
            v = getattr(info, attr, None)
            if v:
                return int(v)
    except Exception:
        pass
    return 64 * 1024 * 1024   # conservative fallback (v7x per-core VMEM)


def _vmem_limit_bytes(S_pad, q_tile, E, c_size, out_size, single_buffer_weights):
    wbuf = 1 if single_buffer_weights else 2
    weights = wbuf * ((3 * E * E + E * E) * c_size + 4 * E * 4)
    io = 2 * S_pad * E * c_size + 2 * q_tile * E * out_size      # dbl-buffered x / out
    scratch = (2 * S_pad * E + 2 * q_tile * E) * c_size          # kv + q + ao slabs
    interm = (2 * S_pad * E + 2 * q_tile * E) * 4 + 2 * q_tile * S_pad * 4
    total = weights + io + scratch + 2 * interm                  # 2x headroom on temps
    phys = _physical_vmem_bytes()
    hi = (phys * 7) // 8        # leave headroom: ~56 MiB (v7x), ~112 MiB (v5e/v6e)
    lo = min(32 * 1024 * 1024, hi)
    return int(min(max(total, lo), hi))


def multi_head_attention(x, wqkv, bqkv, wo, bo, *, n_heads,
                         compute_dtype=jnp.bfloat16, approx_recip=None,
                         q_tile=None, single_buffer_weights=False,
                         out_dtype=None):
    """ViT MultiHeadAttention forward (eval mode).  Weights are (in, out)."""
    B, S, E = x.shape
    assert E % n_heads == 0
    head_dim = E // n_heads
    compute_dtype = jnp.dtype(compute_dtype)
    out_dtype = jnp.dtype(out_dtype) if out_dtype is not None else x.dtype
    if approx_recip is None:
        approx_recip = compute_dtype == jnp.dtype(jnp.bfloat16)

    # Query-tile axis: per head only a (q_tile, S_pad) score tile is live.
    if q_tile is None:
        q_tile = 128 if S > 128 else _round_up(S, 8)
    q_tile = _round_up(max(int(q_tile), 8), 8)
    S_pad = _round_up(S, q_tile)
    n_q = S_pad // q_tile
    if S_pad != S:
        # Pad to keep tiles (8,128)-friendly; padded keys are masked in-kernel,
        # padded query rows are sliced off below.
        x = jnp.pad(x, ((0, 0), (0, S_pad - S), (0, 0)))

    # Cast MXU operands in the wrapper: halves HBM->VMEM DMA for x and the
    # weights on the bf16 fast path.  Biases stay fp32 (added to fp32 acc).
    x = x.astype(compute_dtype)
    wqkv = wqkv.astype(compute_dtype)
    wo = wo.astype(compute_dtype)
    bqkv = bqkv.astype(jnp.float32).reshape(1, 3 * E)
    bo = bo.astype(jnp.float32).reshape(1, E)

    kernel = functools.partial(
        mha_kernel, n_heads=n_heads, head_dim=head_dim, seq_len=S,
        q_tile=q_tile, compute_dtype=compute_dtype, approx_recip=approx_recip)

    def weight_spec(shape):
        if single_buffer_weights:
            # Constant block index => never re-fetched; Buffered(1) halves the
            # weights' VMEM footprint (recommended on v7x's 64 MiB VMEM).
            return pl.BlockSpec(shape, lambda b, qi: (0,) * len(shape),
                                pipeline_mode=pl.Buffered(1))
        return pl.BlockSpec(shape, lambda b, qi: (0,) * len(shape))

    vmem_limit = _vmem_limit_bytes(S_pad, q_tile, E, compute_dtype.itemsize,
                                   out_dtype.itemsize, single_buffer_weights)

    out = pl.pallas_call(
        kernel,
        out_shape=jax.ShapeDtypeStruct((B, S_pad, E), out_dtype),
        grid_spec=pltpu.PrefetchScalarGridSpec(
            num_scalar_prefetch=0,
            grid=(B, n_q),
            in_specs=[
                pl.BlockSpec((None, S_pad, E), lambda b, qi: (b, 0, 0)),  # x
                weight_spec((E, 3 * E)),                                  # fused Wqkv
                weight_spec((1, 3 * E)),                                  # fused bqkv
                weight_spec((E, E)),                                      # Wo
                weight_spec((1, E)),                                      # bo
            ],
            out_specs=pl.BlockSpec((None, q_tile, E), lambda b, qi: (b, qi, 0)),
            scratch_shapes=[
                pltpu.VMEM((S_pad, 2 * E), compute_dtype),   # K|V slab (per batch row)
                pltpu.VMEM((q_tile, E), compute_dtype),      # scaled Q tile
                pltpu.VMEM((q_tile, E), compute_dtype),      # per-head outputs slab
            ],
        ),
        # Batch axis is megacore-parallel; the query-tile axis is "arbitrary"
        # because the K|V scratch computed at qi == 0 is reused by later tiles
        # of the same batch row.
        compiler_params=pltpu.CompilerParams(
            dimension_semantics=("parallel", "arbitrary"),
            vmem_limit_bytes=vmem_limit),
    )(x, wqkv, bqkv, wo, bo)

    if S_pad != S:
        out = out[:, :S, :]
    return out


def mha_reference(x, wqkv, bqkv, wo, bo, *, n_heads):
    """Pure-JAX reference mirroring the PyTorch forward exactly (eval mode)."""
    B, S, E = x.shape
    D = E // n_heads
    qkv = (x @ wqkv + bqkv).reshape(B, S, 3, n_heads, D)
    qkv = jnp.transpose(qkv, (2, 0, 3, 1, 4))
    q, k, v = qkv[0], qkv[1], qkv[2]
    scores = jnp.einsum("bhqd,bhkd->bhqk", q, k) / math.sqrt(D)
    w = jax.nn.softmax(scores, axis=-1)
    out = jnp.einsum("bhqk,bhkd->bhqd", w, v)
    out = out.transpose(0, 2, 1, 3).reshape(B, S, E)
    return out @ wo + bo


if __name__ == "__main__":
    # Small shapes consistent with the module: embed_dim divisible by n_heads.
    B, S, E, H = 2, 8, 32, 4

    key = jax.random.PRNGKey(0)
    ks = jax.random.split(key, 6)

    x = jax.random.normal(ks[0], (B, S, E), dtype=jnp.float32)

    # Deterministic synthetic parameters; weights are (in_features, out_features).
    scale = 1.0 / math.sqrt(E)
    wqkv = jax.random.normal(ks[1], (E, 3 * E), dtype=jnp.float32) * scale
    bqkv = jax.random.normal(ks[2], (3 * E,), dtype=jnp.float32) * 0.01
    wo = jax.random.normal(ks[3], (E, E), dtype=jnp.float32) * scale
    bo = jax.random.normal(ks[4], (E,), dtype=jnp.float32) * 0.01

    ref = mha_reference(x, wqkv, bqkv, wo, bo, n_heads=H)

    # Fast path: bf16 MXU operands + slabs, fp32 softmax/acc, EUP reciprocal.
    out = multi_head_attention(x, wqkv, bqkv, wo, bo, n_heads=H)
    out = jax.block_until_ready(out)
    assert out.shape == (B, S, E)
    assert jnp.allclose(out, ref, atol=5e-2, rtol=5e-2), "bf16 fast path mismatch"

    # Precise path: fp32 MXU operands + exact reciprocal — tight numeric check.
    out_f32 = multi_head_attention(x, wqkv, bqkv, wo, bo, n_heads=H,
                                   compute_dtype=jnp.float32)
    out_f32 = jax.block_until_ready(out_f32)
    assert jnp.allclose(out_f32, ref, atol=2e-4, rtol=2e-4), "fp32 path mismatch"

    # Ragged sequence: exercises padding + key masking + multiple query tiles
    # reusing the per-batch K|V scratch slab (B=1, S=20, q_tile=8 -> 3 tiles).
    B2, S2 = 1, 20
    x2 = jax.random.normal(ks[5], (B2, S2, E), dtype=jnp.float32)
    ref2 = mha_reference(x2, wqkv, bqkv, wo, bo, n_heads=H)
    out2 = multi_head_attention(x2, wqkv, bqkv, wo, bo, n_heads=H,
                                compute_dtype=jnp.float32, q_tile=8)
    out2 = jax.block_until_ready(out2)
    assert out2.shape == (B2, S2, E)
    assert jnp.allclose(out2, ref2, atol=2e-4, rtol=2e-4), "padded/tiled path mismatch"

    print("KERNEL_OK")
</pallas_src>

<mosaic_0001>
module attributes {stable_mosaic.version = 11 : i64} {
  func.func @mha_kernel(%arg0: i32, %arg1: i32, %arg2: memref<1x8x32xbf16, #tpu.memory_space<vmem>>, %arg3: memref<32x96xbf16, #tpu.memory_space<vmem>>, %arg4: memref<1x96xf32, #tpu.memory_space<vmem>>, %arg5: memref<32x32xbf16, #tpu.memory_space<vmem>>, %arg6: memref<1x32xf32, #tpu.memory_space<vmem>>, %arg7: memref<1x8x32xf32, #tpu.memory_space<vmem>>, %arg8: memref<8x64xbf16, #tpu.memory_space<vmem>>, %arg9: memref<8x32xbf16, #tpu.memory_space<vmem>>, %arg10: memref<8x32xbf16, #tpu.memory_space<vmem>>) attributes {dimension_semantics = [#tpu.dimension_semantics<parallel>, #tpu.dimension_semantics<arbitrary>], iteration_bounds = array<i64: 2, 1>, scalar_prefetch = 0 : i64, scratch_operands = 3 : i64, tpu.core_type = #tpu.core_type<tc>, window_params = [{transform_indices = @transform_0, window_bounds = array<i64: 1, 8, 32>}, {pipeline_mode = #tpu.pipeline_mode<synchronous>, transform_indices = @transform_1, window_bounds = array<i64: 32, 96>}, {pipeline_mode = #tpu.pipeline_mode<synchronous>, transform_indices = @transform_2, window_bounds = array<i64: 1, 96>}, {pipeline_mode = #tpu.pipeline_mode<synchronous>, transform_indices = @transform_3, window_bounds = array<i64: 32, 32>}, {pipeline_mode = #tpu.pipeline_mode<synchronous>, transform_indices = @transform_4, window_bounds = array<i64: 1, 32>}, {transform_indices = @transform_5, window_bounds = array<i64: 1, 8, 32>}]} {
    %c0_i32 = arith.constant 0 : i32
    %0 = arith.cmpi eq, %arg1, %c0_i32 : i32
    %1 = arith.extui %0 : i1 to i32
    %c0_i32_0 = arith.constant 0 : i32
    %2 = arith.cmpi ne, %1, %c0_i32_0 : i32
    scf.if %2 {
      %c0_60 = arith.constant 0 : index
      %c0_61 = arith.constant 0 : index
      %c0_62 = arith.constant 0 : index
      %98 = vector.load %arg2[%c0_60, %c0_61, %c0_62] : memref<1x8x32xbf16, #tpu.memory_space<vmem>>, vector<1x8x32xbf16>
      %99 = vector.shape_cast %98 : vector<1x8x32xbf16> to vector<8x32xbf16>
      %c0_63 = arith.constant 0 : index
      %c32_64 = arith.constant 32 : index
      %100 = vector.load %arg3[%c0_63, %c32_64] : memref<32x96xbf16, #tpu.memory_space<vmem>>, vector<32x64xbf16>
      %cst_65 = arith.constant dense<0.000000e+00> : vector<8x64xf32>
      %101 = tpu.matmul %99, %100, %cst_65 {dimension_numbers = #tpu.dot_dimension_numbers<[1], [0], [0], [1], [0, 0, 1, 1], [], []>} : vector<8x32xbf16>, vector<32x64xbf16>, vector<8x64xf32> -> vector<8x64xf32>
      %c0_66 = arith.constant 0 : index
      %c32_67 = arith.constant 32 : index
      %102 = vector.load %arg4[%c0_66, %c32_67] : memref<1x96xf32, #tpu.memory_space<vmem>>, vector<1x64xf32>
      %103 = vector.broadcast %102 : vector<1x64xf32> to vector<8x64xf32>
      %104 = arith.addf %101, %103 : vector<8x64xf32>
      %105 = arith.truncf %104 : vector<8x64xf32> to vector<8x64xbf16>
      %c0_68 = arith.constant 0 : index
      %c0_69 = arith.constant 0 : index
      %106 = vector.load %arg8[%c0_68, %c0_69] : memref<8x64xbf16, #tpu.memory_space<vmem>>, vector<8x64xbf16>
      tpu.vector_store %arg8[%c0_68, %c0_69], %105 {strides = array<i32>} : memref<8x64xbf16, #tpu.memory_space<vmem>>, vector<8x64xbf16>,
    } else {
    }
    %c8_i32 = arith.constant 8 : i32
    %3 = arith.muli %arg1, %c8_i32 : i32
    %4 = tpu.assume_multiple %3, 8 : i32
    %c0 = arith.constant 0 : index
    %5 = arith.index_cast %4 : i32 to index
    %c0_1 = arith.constant 0 : index
    %6 = vector.load %arg2[%c0, %5, %c0_1] : memref<1x8x32xbf16, #tpu.memory_space<vmem>>, vector<1x8x32xbf16>
    %7 = vector.shape_cast %6 : vector<1x8x32xbf16> to vector<8x32xbf16>
    %c0_2 = arith.constant 0 : index
    %c0_3 = arith.constant 0 : index
    %8 = vector.load %arg3[%c0_2, %c0_3] : memref<32x96xbf16, #tpu.memory_space<vmem>>, vector<32x32xbf16>
    %cst = arith.constant dense<0.000000e+00> : vector<8x32xf32>
    %9 = tpu.matmul %7, %8, %cst {dimension_numbers = #tpu.dot_dimension_numbers<[1], [0], [0], [1], [0, 0, 1, 1], [], []>} : vector<8x32xbf16>, vector<32x32xbf16>, vector<8x32xf32> -> vector<8x32xf32>
    %c0_4 = arith.constant 0 : index
    %c0_5 = arith.constant 0 : index
    %10 = vector.load %arg4[%c0_4, %c0_5] : memref<1x96xf32, #tpu.memory_space<vmem>>, vector<1x32xf32>
    %11 = vector.broadcast %10 : vector<1x32xf32> to vector<8x32xf32>
    %12 = arith.addf %9, %11 : vector<8x32xf32>
    %cst_6 = arith.constant 0.353553385 : f32
    %13 = vector.broadcast %cst_6 : f32 to vector<8x32xf32>
    %14 = arith.mulf %12, %13 : vector<8x32xf32>
    %15 = arith.truncf %14 : vector<8x32xf32> to vector<8x32xbf16>
    %c0_7 = arith.constant 0 : index
    %c0_8 = arith.constant 0 : index
    %16 = vector.load %arg9[%c0_7, %c0_8] : memref<8x32xbf16, #tpu.memory_space<vmem>>, vector<8x32xbf16>
    tpu.vector_store %arg9[%c0_7, %c0_8], %15 {strides = array<i32>} : memref<8x32xbf16, #tpu.memory_space<vmem>>, vector<8x32xbf16>,
    %c0_9 = arith.constant 0 : index
    %c0_10 = arith.constant 0 : index
    %17 = vector.load %arg9[%c0_9, %c0_10] : memref<8x32xbf16, #tpu.memory_space<vmem>>, vector<8x8xbf16>
    %c0_11 = arith.constant 0 : index
    %c0_12 = arith.constant 0 : index
    %18 = vector.load %arg8[%c0_11, %c0_12] : memref<8x64xbf16, #tpu.memory_space<vmem>>, vector<8x8xbf16>
    %c0_13 = arith.constant 0 : index
    %c32 = arith.constant 32 : index
    %19 = vector.load %arg8[%c0_13, %c32] : memref<8x64xbf16, #tpu.memory_space<vmem>>, vector<8x8xbf16>
    %cst_14 = arith.constant dense<0.000000e+00> : vector<8x8xf32>
    %20 = tpu.matmul %17, %18, %cst_14 {dimension_numbers = #tpu.dot_dimension_numbers<[1], [1], [0], [0], [0, 0, 1, 0], [], []>} : vector<8x8xbf16>, vector<8x8xbf16>, vector<8x8xf32> -> vector<8x8xf32>
    %cst_15 = arith.constant dense<0xFF800000> : vector<8xf32>
    %21 = vector.multi_reduction <maximumf>, %20, %cst_15 [1] : vector<8x8xf32> to vector<8xf32>
    %22 = vector.shape_cast %21 : vector<8xf32> to vector<8x1xf32>
    %23 = vector.broadcast %22 : vector<8x1xf32> to vector<8x8xf32>
    %24 = arith.subf %20, %23 : vector<8x8xf32>
    %25 = math.exp %24 : vector<8x8xf32>
    %cst_16 = arith.constant dense<0.000000e+00> : vector<8xf32>
    %26 = vector.multi_reduction <add>, %25, %cst_16 [1] : vector<8x8xf32> to vector<8xf32>
    %27 = vector.shape_cast %26 : vector<8xf32> to vector<8x1xf32>
    %28 = tpu.reciprocal %27 {approx = true} : vector<8x1xf32> -> vector<8x1xf32>
    %29 = vector.broadcast %28 : vector<8x1xf32> to vector<8x8xf32>
    %30 = arith.mulf %25, %29 : vector<8x8xf32>
    %31 = arith.truncf %30 : vector<8x8xf32> to vector<8x8xbf16>
    %cst_17 = arith.constant dense<0.000000e+00> : vector<8x8xf32>
    %32 = tpu.matmul %31, %19, %cst_17 {dimension_numbers = #tpu.dot_dimension_numbers<[1], [0], [0], [1], [0, 0, 1, 1], [], []>} : vector<8x8xbf16>, vector<8x8xbf16>, vector<8x8xf32> -> vector<8x8xf32>
    %33 = arith.truncf %32 : vector<8x8xf32> to vector<8x8xbf16>
    %c0_18 = arith.constant 0 : index
    %c0_19 = arith.constant 0 : index
    %34 = vector.load %arg10[%c0_18, %c0_19] : memref<8x32xbf16, #tpu.memory_space<vmem>>, vector<8x8xbf16>
    tpu.vector_store %arg10[%c0_18, %c0_19], %33 {strides = array<i32>} : memref<8x32xbf16, #tpu.memory_space<vmem>>, vector<8x8xbf16>,
    %c0_20 = arith.constant 0 : index
    %c8 = arith.constant 8 : index
    %35 = vector.load %arg9[%c0_20, %c8] : memref<8x32xbf16, #tpu.memory_space<vmem>>, vector<8x8xbf16>
    %c0_21 = arith.constant 0 : index
    %c8_22 = arith.constant 8 : index
    %36 = vector.load %arg8[%c0_21, %c8_22] : memref<8x64xbf16, #tpu.memory_space<vmem>>, vector<8x8xbf16>
    %c0_23 = arith.constant 0 : index
    %c40 = arith.constant 40 : index
    %37 = vector.load %arg8[%c0_23, %c40] : memref<8x64xbf16, #tpu.memory_space<vmem>>, vector<8x8xbf16>
    %cst_24 = arith.constant dense<0.000000e+00> : vector<8x8xf32>
    %38 = tpu.matmul %35, %36, %cst_24 {dimension_numbers = #tpu.dot_dimension_numbers<[1], [1], [0], [0], [0, 0, 1, 0], [], []>} : vector<8x8xbf16>, vector<8x8xbf16>, vector<8x8xf32> -> vector<8x8xf32>
    %cst_25 = arith.constant dense<0xFF800000> : vector<8xf32>
    %39 = vector.multi_reduction <maximumf>, %38, %cst_25 [1] : vector<8x8xf32> to vector<8xf32>
    %40 = vector.shape_cast %39 : vector<8xf32> to vector<8x1xf32>
    %41 = vector.broadcast %40 : vector<8x1xf32> to vector<8x8xf32>
    %42 = arith.subf %38, %41 : vector<8x8xf32>
    %43 = math.exp %42 : vector<8x8xf32>
    %cst_26 = arith.constant dense<0.000000e+00> : vector<8xf32>
    %44 = vector.multi_reduction <add>, %43, %cst_26 [1] : vector<8x8xf32> to vector<8xf32>
    %45 = vector.shape_cast %44 : vector<8xf32> to vector<8x1xf32>
    %46 = tpu.reciprocal %45 {approx = true} : vector<8x1xf32> -> vector<8x1xf32>
    %47 = vector.broadcast %46 : vector<8x1xf32> to vector<8x8xf32>
    %48 = arith.mulf %43, %47 : vector<8x8xf32>
    %49 = arith.truncf %48 : vector<8x8xf32> to vector<8x8xbf16>
    %cst_27 = arith.constant dense<0.000000e+00> : vector<8x8xf32>
    %50 = tpu.matmul %49, %37, %cst_27 {dimension_numbers = #tpu.dot_dimension_numbers<[1], [0], [0], [1], [0, 0, 1, 1], [], []>} : vector<8x8xbf16>, vector<8x8xbf16>, vector<8x8xf32> -> vector<8x8xf32>
    %51 = arith.truncf %50 : vector<8x8xf32> to vector<8x8xbf16>
    %c0_28 = arith.constant 0 : index
    %c8_29 = arith.constant 8 : index
    %52 = vector.load %arg10[%c0_28, %c8_29] : memref<8x32xbf16, #tpu.memory_space<vmem>>, vector<8x8xbf16>
    tpu.vector_store %arg10[%c0_28, %c8_29], %51 {strides = array<i32>} : memref<8x32xbf16, #tpu.memory_space<vmem>>, vector<8x8xbf16>,
    %c0_30 = arith.constant 0 : index
    %c16 = arith.constant 16 : index
    %53 = vector.load %arg9[%c0_30, %c16] : memref<8x32xbf16, #tpu.memory_space<vmem>>, vector<8x8xbf16>
    %c0_31 = arith.constant 0 : index
    %c16_32 = arith.constant 16 : index
    %54 = vector.load %arg8[%c0_31, %c16_32] : memref<8x64xbf16, #tpu.memory_space<vmem>>, vector<8x8xbf16>
    %c0_33 = arith.constant 0 : index
    %c48 = arith.constant 48 : index
    %55 = vector.load %arg8[%c0_33, %c48] : memref<8x64xbf16, #tpu.memory_space<vmem>>, vector<8x8xbf16>
    %cst_34 = arith.constant dense<0.000000e+00> : vector<8x8xf32>
    %56 = tpu.matmul %53, %54, %cst_34 {dimension_numbers = #tpu.dot_dimension_numbers<[1], [1], [0], [0], [0, 0, 1, 0], [], []>} : vector<8x8xbf16>, vector<8x8xbf16>, vector<8x8xf32> -> vector<8x8xf32>
    %cst_35 = arith.constant dense<0xFF800000> : vector<8xf32>
    %57 = vector.multi_reduction <maximumf>, %56, %cst_35 [1] : vector<8x8xf32> to vector<8xf32>
    %58 = vector.shape_cast %57 : vector<8xf32> to vector<8x1xf32>
    %59 = vector.broadcast %58 : vector<8x1xf32> to vector<8x8xf32>
    %60 = arith.subf %56, %59 : vector<8x8xf32>
    %61 = math.exp %60 : vector<8x8xf32>
    %cst_36 = arith.constant dense<0.000000e+00> : vector<8xf32>
    %62 = vector.multi_reduction <add>, %61, %cst_36 [1] : vector<8x8xf32> to vector<8xf32>
    %63 = vector.shape_cast %62 : vector<8xf32> to vector<8x1xf32>
    %64 = tpu.reciprocal %63 {approx = true} : vector<8x1xf32> -> vector<8x1xf32>
    %65 = vector.broadcast %64 : vector<8x1xf32> to vector<8x8xf32>
    %66 = arith.mulf %61, %65 : vector<8x8xf32>
    %67 = arith.truncf %66 : vector<8x8xf32> to vector<8x8xbf16>
    %cst_37 = arith.constant dense<0.000000e+00> : vector<8x8xf32>
    %68 = tpu.matmul %67, %55, %cst_37 {dimension_numbers = #tpu.dot_dimension_numbers<[1], [0], [0], [1], [0, 0, 1, 1], [], []>} : vector<8x8xbf16>, vector<8x8xbf16>, vector<8x8xf32> -> vector<8x8xf32>
    %69 = arith.truncf %68 : vector<8x8xf32> to vector<8x8xbf16>
    %c0_38 = arith.constant 0 : index
    %c16_39 = arith.constant 16 : index
    %70 = vector.load %arg10[%c0_38, %c16_39] : memref<8x32xbf16, #tpu.memory_space<vmem>>, vector<8x8xbf16>
    tpu.vector_store %arg10[%c0_38, %c16_39], %69 {strides = array<i32>} : memref<8x32xbf16, #tpu.memory_space<vmem>>, vector<8x8xbf16>,
    %c0_40 = arith.constant 0 : index
    %c24 = arith.constant 24 : index
    %71 = vector.load %arg9[%c0_40, %c24] : memref<8x32xbf16, #tpu.memory_space<vmem>>, vector<8x8xbf16>
    %c0_41 = arith.constant 0 : index
    %c24_42 = arith.constant 24 : index
    %72 = vector.load %arg8[%c0_41, %c24_42] : memref<8x64xbf16, #tpu.memory_space<vmem>>, vector<8x8xbf16>
    %c0_43 = arith.constant 0 : index
    %c56 = arith.constant 56 : index
    %73 = vector.load %arg8[%c0_43, %c56] : memref<8x64xbf16, #tpu.memory_space<vmem>>, vector<8x8xbf16>
    %cst_44 = arith.constant dense<0.000000e+00> : vector<8x8xf32>
    %74 = tpu.matmul %71, %72, %cst_44 {dimension_numbers = #tpu.dot_dimension_numbers<[1], [1], [0], [0], [0, 0, 1, 0], [], []>} : vector<8x8xbf16>, vector<8x8xbf16>, vector<8x8xf32> -> vector<8x8xf32>
    %cst_45 = arith.constant dense<0xFF800000> : vector<8xf32>
    %75 = vector.multi_reduction <maximumf>, %74, %cst_45 [1] : vector<8x8xf32> to vector<8xf32>
    %76 = vector.shape_cast %75 : vector<8xf32> to vector<8x1xf32>
    %77 = vector.broadcast %76 : vector<8x1xf32> to vector<8x8xf32>
    %78 = arith.subf %74, %77 : vector<8x8xf32>
    %79 = math.exp %78 : vector<8x8xf32>
    %cst_46 = arith.constant dense<0.000000e+00> : vector<8xf32>
    %80 = vector.multi_reduction <add>, %79, %cst_46 [1] : vector<8x8xf32> to vector<8xf32>
    %81 = vector.shape_cast %80 : vector<8xf32> to vector<8x1xf32>
    %82 = tpu.reciprocal %81 {approx = true} : vector<8x1xf32> -> vector<8x1xf32>
    %83 = vector.broadcast %82 : vector<8x1xf32> to vector<8x8xf32>
    %84 = arith.mulf %79, %83 : vector<8x8xf32>
    %85 = arith.truncf %84 : vector<8x8xf32> to vector<8x8xbf16>
    %cst_47 = arith.constant dense<0.000000e+00> : vector<8x8xf32>
    %86 = tpu.matmul %85, %73, %cst_47 {dimension_numbers = #tpu.dot_dimension_numbers<[1], [0], [0], [1], [0, 0, 1, 1], [], []>} : vector<8x8xbf16>, vector<8x8xbf16>, vector<8x8xf32> -> vector<8x8xf32>
    %87 = arith.truncf %86 : vector<8x8xf32> to vector<8x8xbf16>
    %c0_48 = arith.constant 0 : index
    %c24_49 = arith.constant 24 : index
    %88 = vector.load %arg10[%c0_48, %c24_49] : memref<8x32xbf16, #tpu.memory_space<vmem>>, vector<8x8xbf16>
    tpu.vector_store %arg10[%c0_48, %c24_49], %87 {strides = array<i32>} : memref<8x32xbf16, #tpu.memory_space<vmem>>, vector<8x8xbf16>,
    %c0_50 = arith.constant 0 : index
    %c0_51 = arith.constant 0 : index
    %89 = vector.load %arg10[%c0_50, %c0_51] : memref<8x32xbf16, #tpu.memory_space<vmem>>, vector<8x32xbf16>
    %c0_52 = arith.constant 0 : index
    %c0_53 = arith.constant 0 : index
    %90 = vector.load %arg5[%c0_52, %c0_53] : memref<32x32xbf16, #tpu.memory_space<vmem>>, vector<32x32xbf16>
    %cst_54 = arith.constant dense<0.000000e+00> : vector<8x32xf32>
    %91 = tpu.matmul %89, %90, %cst_54 {dimension_numbers = #tpu.dot_dimension_numbers<[1], [0], [0], [1], [0, 0, 1, 1], [], []>} : vector<8x32xbf16>, vector<32x32xbf16>, vector<8x32xf32> -> vector<8x32xf32>
    %c0_55 = arith.constant 0 : index
    %c0_56 = arith.constant 0 : index
    %92 = vector.load %arg6[%c0_55, %c0_56] : memref<1x32xf32, #tpu.memory_space<vmem>>, vector<1x32xf32>
    %93 = vector.broadcast %92 : vector<1x32xf32> to vector<8x32xf32>
    %94 = arith.addf %91, %93 : vector<8x32xf32>
    %c0_57 = arith.constant 0 : index
    %c0_58 = arith.constant 0 : index
    %c0_59 = arith.constant 0 : index
    %95 = vector.load %arg7[%c0_57, %c0_58, %c0_59] : memref<1x8x32xf32, #tpu.memory_space<vmem>>, vector<1x8x32xf32>
    %96 = vector.shape_cast %95 : vector<1x8x32xf32> to vector<8x32xf32>
    %97 = vector.shape_cast %94 : vector<8x32xf32> to vector<1x8x32xf32>
    tpu.vector_store %arg7[%c0_57, %c0_58, %c0_59], %97 {strides = array<i32>} : memref<1x8x32xf32, #tpu.memory_space<vmem>>, vector<1x8x32xf32>,
    return
  }
  func.func @transform_0(%arg0: i32, %arg1: i32) -> (i32, i32, i32) {
    %c0_i32 = arith.constant 0 : i32
    %c0_i32_0 = arith.constant 0 : i32
    %c0_i32_1 = arith.constant 0 : i32
    return %arg0, %c0_i32, %c0_i32_0 : i32, i32, i32
  }
  func.func @transform_1(%arg0: i32, %arg1: i32) -> (i32, i32) {
    %c0_i32 = arith.constant 0 : i32
    %c0_i32_0 = arith.constant 0 : i32
    %c0_i32_1 = arith.constant 0 : i32
    return %c0_i32, %c0_i32_0 : i32, i32
  }
  func.func @transform_2(%arg0: i32, %arg1: i32) -> (i32, i32) {
    %c0_i32 = arith.constant 0 : i32
    %c0_i32_0 = arith.constant 0 : i32
    %c0_i32_1 = arith.constant 0 : i32
    return %c0_i32, %c0_i32_0 : i32, i32
  }
  func.func @transform_3(%arg0: i32, %arg1: i32) -> (i32, i32) {
    %c0_i32 = arith.constant 0 : i32
    %c0_i32_0 = arith.constant 0 : i32
    %c0_i32_1 = arith.constant 0 : i32
    return %c0_i32, %c0_i32_0 : i32, i32
  }
  func.func @transform_4(%arg0: i32, %arg1: i32) -> (i32, i32) {
    %c0_i32 = arith.constant 0 : i32
    %c0_i32_0 = arith.constant 0 : i32
    %c0_i32_1 = arith.constant 0 : i32
    return %c0_i32, %c0_i32_0 : i32, i32
  }
  func.func @transform_5(%arg0: i32, %arg1: i32) -> (i32, i32, i32) {
    %c0_i32 = arith.constant 0 : i32
    %c0_i32_0 = arith.constant 0 : i32
    return %arg0, %arg1, %c0_i32 : i32, i32, i32
  }
}

</mosaic_0001>

<llo_original>
// kernel: tpu_custom_call.1
$region0: #{tpu_custom_call.1}
  #allocation0 [shape = 'u32[]', space=smem, size = 0x4, offset = 0x4, fixed_abs, tag = 'smem constant byte address 0x4 - core index']
  #allocation1 [shape = 'u32[144,128]{1,0:T(1,128)}', space=vmem, size = 0x12000, scoped, tag = 'internal scratch']
  #allocation2 [shape = 'bf16[8,64]{1,0:T(8,128)(2,1)}', space=vmem, size = 0x800, scoped, tag = 'scratch operand']
  #allocation3 [shape = 'bf16[8,32]{1,0:T(8,128)(2,1)}', space=vmem, size = 0x800, scoped, tag = 'scratch operand']
  #allocation4 [shape = 'bf16[8,32]{1,0:T(8,128)(2,1)}', space=vmem, size = 0x800, scoped, tag = 'scratch operand']
  %s0 = inlined_call_operand.hbm [shape: bf16[2,8,32], index: 0, kind: input, shape index: {}]
  %s1 = inlined_call_operand.hbm [shape: bf16[32,96], index: 1, kind: input, shape index: {}]
  %s2 = inlined_call_operand.vmem [shape: f32[1,96], index: 2, kind: input, shape index: {}]
  %s3 = inlined_call_operand.hbm [shape: bf16[32,32], index: 3, kind: input, shape index: {}]
  %s4 = inlined_call_operand.vmem [shape: f32[1,32], index: 4, kind: input, shape index: {}]
  %s5 = inlined_call_operand.hbm [shape: f32[2,8,32], index: 5, kind: output, shape index: {}]
  %s6 = sld [smem:[#allocation0]]
  $region69: #{tpu_custom_call.1} parent=0
    _
  %s8 = ssub.s32 1, %s6
  %s9 = scalar_select 0, %s8, %s6
  $region1: #{tpu_custom_call.1} parent=0
    #allocation5 [shape = 'u8[4096]{0}', space=vmem, size = 0x1000, scoped, tag = 'input window, operand 0']
    #allocation6 [shape = 's32[2]{0}', space=sflag, size = 0x8, scoped, tag = 'scoped memory for tpu_custom_call.1']
    #allocation7 [shape = 's32[2]{0}', space=sflag, size = 0x8, scoped, tag = 'scoped memory for tpu_custom_call.1']
    #allocation8 [shape = 'u8[8192]{0}', space=vmem, size = 0x2000, scoped, tag = 'input window, operand 1, single buffered']
    #allocation9 [shape = 's32[1]{0}', space=sflag, size = 0x4, scoped, tag = 'scoped memory for tpu_custom_call.1']
    #allocation10 [shape = 'u8[8192]{0}', space=vmem, size = 0x2000, scoped, tag = 'input window, operand 3, single buffered']
    #allocation11 [shape = 'u8[8192]{0}', space=vmem, size = 0x2000, scoped, tag = 'output window, operand 0']
    %10 = vsyncpa [#allocation6], 0
    %s11 = scalar_lea.sflag [#allocation6], 1
    %12 = vsyncpa %s11, 0
    %13 = vsyncpa [#allocation9], 0
    %14 = vsyncpa [#allocation7], 0
    %s15 = scalar_lea.sflag [#allocation7], 1
    %16 = vsyncpa %s15, 0
    loop: start=0, step=1, limit=4
    $region2: #{tpu_custom_call.1} parent=1 // loop_pre_header
      _
    $region3: #{tpu_custom_call.1} parent=1 // loop_header
      %s18 = sphi 0, %s22
      %p19 = scmp.ge.s32.totalorder %s18, 4
      %s25 = sphi 0, %s37
      %s26 = sphi 0, %s33
      %s27 = sphi 0, %s25
      %s28 = sphi 0, %s26
      %s29 = sphi 0, %s27
      %s30 = sphi 0, %s28
      %s40 = sphi 0, %s42
      %s43 = sphi 0, %s40
      %s44 = sphi 0, %s43
      %s60 = sphi 0, %s44
      %s64 = sphi 0, %s64
      %s66 = sphi 0, %s64
      %s67 = sphi 0, %s66
      %s81 = sphi 0, %s67
      %s85 = sphi 0, %s85
      %s87 = sphi 0, %s85
      %s88 = sphi 0, %s87
      %s102 = sphi 0, %s88
      %s106 = sphi 0, %s106
      %s108 = sphi 0, %s106
      %s109 = sphi 0, %s108
      %s123 = sphi 0, %s109
      %s127 = sphi 0, %s127
      %s129 = sphi 0, %s127
      %s130 = sphi 0, %s129
      %s144 = sphi 0, %s130
      %s152 = sphi 0, %s154
      %s155 = sphi 0, %s152
      %s156 = sphi 0, %s155
      %s172 = sphi 0, %s156
    $region4: #{tpu_custom_call.1} parent=1 // loop_header_branch
      %21 = sbr.rel (%p19) target = $region8
    $region5: #{tpu_custom_call.1} parent=1 // loop_body
      %s23 = ssub.s32 %s18, 1
      %s24 = ssub.s32 %s18, 2
      %s31 = sadd.s32 1, %s26
      %p32 = scmp.ge.s32.totalorder %s31, 1
      %s33 = scalar_select %p32, 0, %s31
      %s34 = sadd.s32 1, %s25
      %s35 = scalar_select %p32, %s34, %s25
      %p36 = scmp.ge.s32.totalorder %s35, 2
      %s37 = scalar_select %p36, 0, %s35
      %s38 = ssub.s32 %s25, %s37
      %p39 = scmp.eq.s32.totalorder %s38, 0
      %s41 = sadd.s32 %s40, 1
      %s42 = scalar_select %p39, %s40, %s41
      %p45 = pneg %p39
      %p46 = scmp.eq.s32.totalorder %s18, 1
      %p47 = por %p45, %p46
      %p48 = scmp.ne.s32.totalorder %s40, %s43
      %p49 = scmp.eq.s32.totalorder %s18, 0
      %p50 = por %p48, %p49
      %p51 = scmp.ne.s32.totalorder %s40, %s43
      %p52 = scmp.eq.s32.totalorder %s23, 1
      %p53 = por %p51, %p52
      %p54 = scmp.ne.s32.totalorder %s43, %s44
      %p55 = scmp.eq.s32.totalorder %s23, 0
      %p56 = por %p54, %p55
      %p57 = scmp.ne.s32.totalorder %s43, %s44
      %p58 = scmp.eq.s32.totalorder %s24, 1
      %p59 = por %p57, %p58
      %p61 = scmp.ne.s32.totalorder %s44, %s60
      %p62 = scmp.eq.s32.totalorder %s24, 0
      %p63 = por %p61, %p62
      %s65 = sadd.s32 %s64, 1
      %p68 = scmp.eq.s32.totalorder %s18, 1
      %p69 = scmp.ne.s32.totalorder %s64, %s66
      %p70 = scmp.eq.s32.totalorder %s18, 0
      %p71 = por %p69, %p70
      %p72 = scmp.ne.s32.totalorder %s64, %s66
      %p73 = scmp.eq.s32.totalorder %s23, 1
      %p74 = por %p72, %p73
      %p75 = scmp.ne.s32.totalorder %s66, %s67
      %p76 = scmp.eq.s32.totalorder %s23, 0
      %p77 = por %p75, %p76
      %p78 = scmp.ne.s32.totalorder %s66, %s67
      %p79 = scmp.eq.s32.totalorder %s24, 1
      %p80 = por %p78, %p79
      %p82 = scmp.ne.s32.totalorder %s67, %s81
      %p83 = scmp.eq.s32.totalorder %s24, 0
      %p84 = por %p82, %p83
      %s86 = sadd.s32 %s85, 1
      %p89 = scmp.eq.s32.totalorder %s18, 1
      %p90 = scmp.ne.s32.totalorder %s85, %s87
      %p91 = scmp.eq.s32.totalorder %s18, 0
      %p92 = por %p90, %p91
      %p93 = scmp.ne.s32.totalorder %s85, %s87
      %p94 = scmp.eq.s32.totalorder %s23, 1
      %p95 = por %p93, %p94
      %p96 = scmp.ne.s32.totalorder %s87, %s88
      %p97 = scmp.eq.s32.totalorder %s23, 0
      %p98 = por %p96, %p97
      %p99 = scmp.ne.s32.totalorder %s87, %s88
      %p100 = scmp.eq.s32.totalorder %s24, 1
      %p101 = por %p99, %p100
      %p103 = scmp.ne.s32.totalorder %s88, %s102
      %p104 = scmp.eq.s32.totalorder %s24, 0
      %p105 = por %p103, %p104
      %s107 = sadd.s32 %s106, 1
      %p110 = scmp.eq.s32.totalorder %s18, 1
      %p111 = scmp.ne.s32.totalorder %s106, %s108
      %p112 = scmp.eq.s32.totalorder %s18, 0
      %p113 = por %p111, %p112
      %p114 = scmp.ne.s32.totalorder %s106, %s108
      %p115 = scmp.eq.s32.totalorder %s23, 1
      %p116 = por %p114, %p115
      %p117 = scmp.ne.s32.totalorder %s108, %s109
      %p118 = scmp.eq.s32.totalorder %s23, 0
      %p119 = por %p117, %p118
      %p120 = scmp.ne.s32.totalorder %s108, %s109
      %p121 = scmp.eq.s32.totalorder %s24, 1
      %p122 = por %p120, %p121
      %p124 = scmp.ne.s32.totalorder %s109, %s123
      %p125 = scmp.eq.s32.totalorder %s24, 0
      %p126 = por %p124, %p125
      %s128 = sadd.s32 %s127, 1
      %p131 = scmp.eq.s32.totalorder %s18, 1
      %p132 = scmp.ne.s32.totalorder %s127, %s129
      %p133 = scmp.eq.s32.totalorder %s18, 0
      %p134 = por %p132, %p133
      %p135 = scmp.ne.s32.totalorder %s127, %s129
      %p136 = scmp.eq.s32.totalorder %s23, 1
      %p137 = por %p135, %p136
      %p138 = scmp.ne.s32.totalorder %s129, %s130
      %p139 = scmp.eq.s32.totalorder %s23, 0
      %p140 = por %p138, %p139
      %p141 = scmp.ne.s32.totalorder %s129, %s130
      %p142 = scmp.eq.s32.totalorder %s24, 1
      %p143 = por %p141, %p142
      %p145 = scmp.ne.s32.totalorder %s130, %s144
      %p146 = scmp.eq.s32.totalorder %s24, 0
      %p147 = por %p145, %p146
      %s148 = ssub.s32 %s25, %s37
      %s149 = ssub.s32 %s26, %s33
      %s150 = sor.u32 %s148, %s149
      %p151 = scmp.eq.s32.totalorder %s150, 0
      %s153 = sadd.s32 %s152, 1
      %s154 = scalar_select %p151, %s152, %s153
      %p157 = pneg %p151
      %p158 = scmp.eq.s32.totalorder %s18, 1
      %p159 = por %p157, %p158
      %p160 = scmp.ne.s32.totalorder %s152, %s155
      %p161 = scmp.eq.s32.totalorder %s18, 0
      %p162 = por %p160, %p161
      %p163 = scmp.ne.s32.totalorder %s152, %s155
      %p164 = scmp.eq.s32.totalorder %s23, 1
      %p165 = por %p163, %p164
      %p166 = scmp.ne.s32.totalorder %s155, %s156
      %p167 = scmp.eq.s32.totalorder %s23, 0
      %p168 = por %p166, %p167
      %p169 = scmp.ne.s32.totalorder %s155, %s156
      %p170 = scmp.eq.s32.totalorder %s24, 1
      %p171 = por %p169, %p170
      %p173 = scmp.ne.s32.totalorder %s156, %s172
      %p174 = scmp.eq.s32.totalorder %s24, 0
      %p175 = por %p173, %p174
      %p176 = scmp.le.s32.totalorder 1, %s18
      %p177 = scmp.lt.s32.totalorder %s18, 3
      %p178 = pnand %p176, %p177
      %p179 = pneg %p178
      // Predicated region
      $region9: #{tpu_custom_call.1} parent=5 // pred_check
        _
      $region10: #{tpu_custom_call.1} parent=5 // pred_check_branch
        %181 = sbr.rel (%p178) target = $region12
      $region11: #{tpu_custom_call.1} parent=5 // pred_region
        %s182 = ssub.s32 %s18, 1
        // Predicated region
        $region13: #{tpu_custom_call.1} parent=11 // pred_check
          %p183 = pneg %p77
        $region14: #{tpu_custom_call.1} parent=11 // pred_check_branch
          %185 = sbr.rel (%p183) target = $region16
        $region15: #{tpu_custom_call.1} parent=11 // pred_region
          %s187 = ssub.s32 256, 256
          %188 = vsyncadd [#allocation9], %s187
          %s189 = sshll.u32 [#allocation8], 4
          %s190 = int_to_ptr.vmem [resolvable:$true] %s189
          %195 = dma.hbm_to_vmem [thread:$0]  %s1, 256, %s190, [#allocation9], 64, 64, 4
        $region16: #{tpu_custom_call.1} parent=11 // pred_fallthru
          _
        // Predicated region
        $region17: #{tpu_custom_call.1} parent=11 // pred_check
          %p196 = pneg %p98
        $region18: #{tpu_custom_call.1} parent=11 // pred_check_branch
          %198 = sbr.rel (%p196) target = $region20
        $region19: #{tpu_custom_call.1} parent=11 // pred_region
          _
        $region20: #{tpu_custom_call.1} parent=11 // pred_fallthru
          _
        // Predicated region
        $region21: #{tpu_custom_call.1} parent=11 // pred_check
          %p199 = pneg %p119
        $region22: #{tpu_custom_call.1} parent=11 // pred_check_branch
          %201 = sbr.rel (%p199) target = $region24
        $region23: #{tpu_custom_call.1} parent=11 // pred_region
          %s203 = ssub.s32 256, 256
          %204 = vsyncadd [#allocation9], %s203
          %s205 = sshll.u32 [#allocation10], 4
          %s206 = int_to_ptr.vmem [resolvable:$true] %s205
          %211 = dma.hbm_to_vmem [thread:$0]  %s3, 256, %s206, [#allocation9], 64, 64, 4
        $region24: #{tpu_custom_call.1} parent=11 // pred_fallthru
          _
        // Predicated region
        $region25: #{tpu_custom_call.1} parent=11 // pred_check
          %p212 = pneg %p140
        $region26: #{tpu_custom_call.1} parent=11 // pred_check_branch
          %214 = sbr.rel (%p212) target = $region28
        $region27: #{tpu_custom_call.1} parent=11 // pred_region
          _
        $region28: #{tpu_custom_call.1} parent=11 // pred_fallthru
          _
      $region12: #{tpu_custom_call.1} parent=5 // pred_fallthru
        _
      %p215 = scmp.lt.s32.totalorder %s18, 2
      // Predicated region
      $region29: #{tpu_custom_call.1} parent=5 // pred_check
        %p216 = pneg %p215
      $region30: #{tpu_custom_call.1} parent=5 // pred_check_branch
        %218 = sbr.rel (%p216) target = $region32
      $region31: #{tpu_custom_call.1} parent=5 // pred_region
        // Predicated region
        $region33: #{tpu_custom_call.1} parent=31 // pred_check
          %p219 = pneg %p50
        $region34: #{tpu_custom_call.1} parent=31 // pred_check_branch
          %221 = sbr.rel (%p219) target = $region36
        $region35: #{tpu_custom_call.1} parent=31 // pred_region
          %s222 = sand.u32 %s40, 1
          %s223 = scalar_lea.sflag [#allocation6], %s222
          %s224 = sand.u32 %s40, 1
          %s225 = smul.addr %s224, 4
          %s226 = scalar_lea.vmem [#allocation5], %s225
          %s228 = ssub.s32 64, 64
          %229 = vsyncadd %s223, %s228
          %s230 = smul.addr %s25, 64
          %s231 = scalar_lea.hbm %s0, %s230
          %s233 = sshll.u32 %s226, 4
          %s234 = int_to_ptr.vmem [resolvable:$true] %s233
          %236 = dma.hbm_to_vmem [thread:$0]  %s231, 64, %s234, %s223
        $region36: #{tpu_custom_call.1} parent=31 // pred_fallthru
          _
      $region32: #{tpu_custom_call.1} parent=5 // pred_fallthru
        _
      %p237 = scmp.le.s32.totalorder 1, %s18
      %p238 = scmp.lt.s32.totalorder %s18, 3
      %p239 = pnand %p237, %p238
      %p240 = pneg %p239
      // Predicated region
      $region37: #{tpu_custom_call.1} parent=5 // pred_check
        _
      $region38: #{tpu_custom_call.1} parent=5 // pred_check_branch
        %242 = sbr.rel (%p239) target = $region40
      $region39: #{tpu_custom_call.1} parent=5 // pred_region
        %s243 = ssub.s32 %s18, 1
        %s244 = sand.u32 %s43, 1
        %s245 = scalar_lea.sflag [#allocation6], %s244
        %s246 = sand.u32 %s43, 1
        %s247 = smul.addr %s246, 4
        %s248 = scalar_lea.vmem [#allocation5], %s247
        // Predicated region
        $region41: #{tpu_custom_call.1} parent=39 // pred_check
          %p249 = pneg %p56
        $region42: #{tpu_custom_call.1} parent=39 // pred_check_branch
          %251 = sbr.rel (%p249) target = $region44
        $region43: #{tpu_custom_call.1} parent=39 // pred_region
          %252 = dma.done %s245, 64
        $region44: #{tpu_custom_call.1} parent=39 // pred_fallthru
          _
        // Predicated region
        $region45: #{tpu_custom_call.1} parent=39 // pred_check
          %p253 = pneg %p77
        $region46: #{tpu_custom_call.1} parent=39 // pred_check_branch
          %255 = sbr.rel (%p253) target = $region48
        $region47: #{tpu_custom_call.1} parent=39 // pred_region
          %256 = dma.done [#allocation9], 256
        $region48: #{tpu_custom_call.1} parent=39 // pred_fallthru
          _
        // Predicated region
        $region49: #{tpu_custom_call.1} parent=39 // pred_check
          %p257 = pneg %p119
        $region50: #{tpu_custom_call.1} parent=39 // pred_check_branch
          %259 = sbr.rel (%p257) target = $region52
        $region51: #{tpu_custom_call.1} parent=39 // pred_region
          %260 = dma.done [#allocation9], 256
        $region52: #{tpu_custom_call.1} parent=39 // pred_fallthru
          _
        %s261 = sand.u32 %s43, 1
        %s262 = scalar_lea.sflag [#allocation6], %s261
        %s263 = sand.u32 %s43, 1
        %s264 = smul.addr %s263, 4
        %s265 = scalar_lea.vmem [#allocation5], %s264
        %p266 = pneg %p56
        %p267 = pneg %p53
        %p268 = pneg %p77
        %p269 = pneg %p74
        %p270 = pneg %p98
        %p271 = pneg %p95
        %p272 = pneg %p119
        %p273 = pneg %p116
        %p274 = pneg %p140
        %p275 = pneg %p137
        %p276 = pneg %p168
        %p277 = pneg %p165
        %s278 = sand.u32 %s155, 1
        %s279 = scalar_lea.sflag [#allocation7], %s278
        %s280 = sand.u32 %s155, 1
        %s281 = smul.addr %s280, 8
        %s282 = scalar_lea.vmem [#allocation11], %s281
        %p284 = scmp.eq.s32.totalorder %s28, 0
        // Predicated region
        $region53: #{tpu_custom_call.1} parent=39 // pred_check
          %p285 = pneg %p284
        $region54: #{tpu_custom_call.1} parent=39 // pred_check_branch
          %287 = sbr.rel (%p285) target = $region56
        $region55: #{tpu_custom_call.1} parent=39 // pred_region
          %v288 = vld [vmem:[%s248] sm:$0xf]
          %v289 = vld [vmem:[#allocation8] sm:$0xf]
          %v290 = vld [vmem:[#allocation8 + $0x4] sm:$0xf]
          %v291 = vld [vmem:[#allocation8 + $0x8] sm:$0xf]
          %v292 = vld [vmem:[#allocation8 + $0xc] sm:$0xf]
          %v293 = vld [vmem:[%s2] sm:$0x1]
          %v295 = vlaneseq
          %v296 = vshrl.u32 %v295, 7
          %v297 = vsub.s32 0, %v296
          %v298 = vrot.slane %v293, %v297
          %v303 = vunpack.c.l.b16 %v289
          %v304 = vunpack.c.l.b16 %v290
          %v305 = vunpack.c.l.b16 %v291
          %v306 = vunpack.c.l.b16 %v292
          %v307 = vpack.c.b16 %v304, %v303
          %v308 = vpack.c.b16 %v306, %v305
          %309 = vrot.lane.b32.xlu0 %v307, 96
          %v310 = vpop.permute.xlu0 %309
          %311 = vrot.lane.b32.xlu0 %v308, 96
          %v312 = vpop.permute.xlu0 %311
          %315 = vrot.lane.b32.xlu0 %v298, 96
          %v316 = vpop.permute.xlu0 %315
          %vm318 = vcmask 261120
          %v320 = vsel %vm318, %v288, 0
          %322 = vmatprep.subr.bf16.mxu0 0
          %323 = vmatpush1.bf16.msra.mxu0 0
          %324 = vmatprep.subr.bf16.mxu0 0
          %325 = vmatpush1.bf16.msra.mxu0 0
          %326 = vmatprep.subr.bf16.mxu0 0
          %327 = vmatpush1.bf16.msra.mxu0 0
          %328 = vmatprep.subr.bf16.mxu0 0
          %329 = vmatpush1.bf16.msra.mxu0 0
          %330 = vmatprep.subr.bf16.mxu0 0
          %331 = vmatpush1.bf16.msra.mxu0 0
          %332 = vmatprep.subr.bf16.mxu0 0
          %333 = vmatpush1.bf16.msra.mxu0 0
          %334 = vmatprep.subr.bf16.mxu0 0
          %335 = vmatpush1.bf16.msra.mxu0 %v312
          %336 = vmatprep.subr.bf16.mxu0 0
          %337 = vmatpush1.bf16.msra.mxu0 %v310
          %338 = vmatprep.subr.bf16.mxu0 0
          %339 = vmatpush2.bf16.msra.mxu0 0
          %340 = vmatprep.subr.bf16.mxu0 0
          %341 = vmatpush2.bf16.msra.mxu0 0
          %342 = vmatprep.subr.bf16.mxu0 0
          %343 = vmatpush2.bf16.msra.mxu0 0
          %344 = vmatprep.subr.bf16.mxu0 0
          %345 = vmatpush2.bf16.msra.mxu0 0
          %346 = vmatprep.subr.bf16.mxu0 0
          %347 = vmatpush2.bf16.msra.mxu0 0
          %348 = vmatprep.subr.bf16.mxu0 0
          %349 = vmatpush2.bf16.msra.mxu0 0
          %350 = vmatprep.subr.bf16.mxu0 0
          %351 = vmatpush2.bf16.msra.mxu0 0
          %352 = vmatprep.subr.bf16.mxu0 0
          %353 = vmatpush2.bf16.msra.mxu0 0
          %354 = vmatprep.mubr.bf16.mxu0 0
          %355 = vmatmul.mubr.bf16.gmra.mxu0 %v320
          %v356 = vpop.f32.mrf.mxu0
          %v357 = vadd.f32 %v316, %v356
          %v358 = vpop.f32.mrf.mxu0
          %v359 = vpop.f32.mrf.mxu0
          %v360 = vpop.f32.mrf.mxu0
          %361 = vdwg.mxu0
          %v362 = vpack.c.bf16 %v357, %v357
          %vm363 = vcmask 519168
          %364 = vst.msk [vmem:[#allocation2] sm:$0xf] %vm363, %v362
        $region56: #{tpu_custom_call.1} parent=39 // pred_fallthru
          _
        %s365 = smul.u32 %s28, 8
        %s366 = sshra.s32 %s365, 3
        %s367 = sand.u32 %s365, 7
        %s368 = smul.addr %s366, 4
        %s369 = scalar_lea.vmem %s248, %s368 [#allocation5]
        %v370 = vld [vmem:[%s369] sm:$0xf]
        %v371 = vld [vmem:[#allocation8] sm:$0xf]
        %v372 = vld [vmem:[#allocation8 + $0x4] sm:$0xf]
        %v373 = vld [vmem:[#allocation8 + $0x8] sm:$0xf]
        %v374 = vld [vmem:[#allocation8 + $0xc] sm:$0xf]
        %v375 = vld [vmem:[%s2] sm:$0x1]
        %v377 = vlaneseq
        %v378 = vshrl.u32 %v377, 7
        %v379 = vsub.s32 0, %v378
        %v380 = vrot.slane %v375, %v379
        %v386 = vunpack.c.l.b16 %v371
        %v387 = vunpack.c.l.b16 %v372
        %v388 = vunpack.c.l.b16 %v373
        %v389 = vunpack.c.l.b16 %v374
        %v390 = vpack.c.b16 %v387, %v386
        %v391 = vpack.c.b16 %v389, %v388
        %vm394 = vcmask 261120
        %v396 = vsel %vm394, %v370, 0
        %398 = vmatprep.subr.bf16.mxu0 0
        %399 = vmatpush1.bf16.msra.mxu0 0
        %400 = vmatprep.subr.bf16.mxu0 0
        %401 = vmatpush1.bf16.msra.mxu0 0
        %402 = vmatprep.subr.bf16.mxu0 0
        %403 = vmatpush1.bf16.msra.mxu0 0
        %404 = vmatprep.subr.bf16.mxu0 0
        %405 = vmatpush1.bf16.msra.mxu0 0
        %406 = vmatprep.subr.bf16.mxu0 0
        %407 = vmatpush1.bf16.msra.mxu0 0
        %408 = vmatprep.subr.bf16.mxu0 0
        %409 = vmatpush1.bf16.msra.mxu0 0
        %410 = vmatprep.subr.bf16.mxu0 0
        %411 = vmatpush1.bf16.msra.mxu0 %v391
        %412 = vmatprep.subr.bf16.mxu0 0
        %413 = vmatpush1.bf16.msra.mxu0 %v390
        %414 = vmatprep.subr.bf16.mxu0 0
        %415 = vmatpush2.bf16.msra.mxu0 0
        %416 = vmatprep.subr.bf16.mxu0 0
        %417 = vmatpush2.bf16.msra.mxu0 0
        %418 = vmatprep.subr.bf16.mxu0 0
        %419 = vmatpush2.bf16.msra.mxu0 0
        %420 = vmatprep.subr.bf16.mxu0 0
        %421 = vmatpush2.bf16.msra.mxu0 0
        %422 = vmatprep.subr.bf16.mxu0 0
        %423 = vmatpush2.bf16.msra.mxu0 0
        %424 = vmatprep.subr.bf16.mxu0 0
        %425 = vmatpush2.bf16.msra.mxu0 0
        %426 = vmatprep.subr.bf16.mxu0 0
        %427 = vmatpush2.bf16.msra.mxu0 0
        %428 = vmatprep.subr.bf16.mxu0 0
        %429 = vmatpush2.bf16.msra.mxu0 0
        %430 = vmatprep.mubr.bf16.mxu0 0
        %431 = vmatmul.mubr.bf16.gmra.mxu0 %v396
        %v432 = vpop.f32.mrf.mxu0
        %v433 = vadd.f32 %v380, %v432
        %v434 = vpop.f32.mrf.mxu0
        %v435 = vpop.f32.mrf.mxu0
        %v436 = vpop.f32.mrf.mxu0
        %437 = vdwg.mxu0
        %v438 = vmul.f32 %v433, 0.35355338
        %v439 = vpack.c.bf16 %v438, %v438
        %vm440 = vcmask 257024
        %441 = vst.msk [vmem:[#allocation3] sm:$0xf] %vm440, %v439
        %v442 = vld [vmem:[#allocation3] sm:$0xf]
        %v443 = vld [vmem:[#allocation2] sm:$0xf]
        %vm444 = vcmask 64512
        %v446 = vsel %vm444, %v442, 0
        %v449 = vsel %vm444, %v443, 0
        %451 = vmatprep.subr.bf16.mxu0 0
        %452 = vmatpush1.bf16.xpose.msra.mxu0 0
        %453 = vmatprep.subr.bf16.mxu0 0
        %454 = vmatpush1.bf16.xpose.msra.mxu0 0
        %455 = vmatprep.subr.bf16.mxu0 0
        %456 = vmatpush1.bf16.xpose.msra.mxu0 0
        %457 = vmatprep.subr.bf16.mxu0 0
        %458 = vmatpush1.bf16.xpose.msra.mxu0 0
        %459 = vmatprep.subr.bf16.mxu0 0
        %460 = vmatpush1.bf16.xpose.msra.mxu0 0
        %461 = vmatprep.subr.bf16.mxu0 0
        %462 = vmatpush1.bf16.xpose.msra.mxu0 0
        %463 = vmatprep.subr.bf16.mxu0 0
        %464 = vmatpush1.bf16.xpose.msra.mxu0 0
        %465 = vmatprep.subr.bf16.mxu0 0
        %466 = vmatpush1.bf16.xpose.msra.mxu0 %v449
        %467 = vmatprep.subr.bf16.mxu0 0
        %468 = vmatpush2.bf16.xpose.msra.mxu0 0
        %469 = vmatprep.subr.bf16.mxu0 0
        %470 = vmatpush2.bf16.xpose.msra.mxu0 0
        %471 = vmatprep.subr.bf16.mxu0 0
        %472 = vmatpush2.bf16.xpose.msra.mxu0 0
        %473 = vmatprep.subr.bf16.mxu0 0
        %474 = vmatpush2.bf16.xpose.msra.mxu0 0
        %475 = vmatprep.subr.bf16.mxu0 0
        %476 = vmatpush2.bf16.xpose.msra.mxu0 0
        %477 = vmatprep.subr.bf16.mxu0 0
        %478 = vmatpush2.bf16.xpose.msra.mxu0 0
        %479 = vmatprep.subr.bf16.mxu0 0
        %480 = vmatpush2.bf16.xpose.msra.mxu0 0
        %481 = vmatprep.subr.bf16.mxu0 0
        %482 = vmatpush2.bf16.xpose.msra.mxu0 0
        %483 = vmatprep.mubr.bf16.mxu0 0
        %484 = vmatmul.mubr.bf16.gmra.mxu0 %v446
        %v485 = vpop.f32.mrf.mxu0
        %v486 = vadd.f32 0.0, %v485
        %v487 = vpop.f32.mrf.mxu0
        %v488 = vpop.f32.mrf.mxu0
        %v489 = vpop.f32.mrf.mxu0
        %490 = vdwg.mxu0
        %v491 = vsel %vm444, %v486, -inf
        %492 = vmax.xlane.f32.xlu0 %v491
        %v493 = vpop.xlane.xlu0 %492
        %v494 = vsub.f32 %v486, %v493
        %v495 = vmul.f32 %v494, 1.442695
        %v496 = vpow.pop %v495
        %v497 = vsel %vm444, %v496, 0.0
        %498 = vadd.xlane.f32.xlu0 %v497
        %v499 = vpop.xlane.xlu0 %498
        %v500 = vrcp.pop %v499
        %v501 = vmul.f32 %v496, %v500
        %v502 = vpack.c.bf16 %v501, %v501
        %v504 = vunpack.c.l.b16 %v443
        %v505 = vpack.c.b16 %v504, %v504
        %506 = vrot.lane.b32.xlu0 %v505, 96
        %v507 = vpop.permute.xlu0 %506
        %v509 = vsel %vm444, %v502, 0
        %vm511 = vcmask 1043456
        %v513 = vsel %vm511, %v507, 0
        %515 = vmatprep.subr.bf16.mxu0 0
        %516 = vmatpush1.bf16.msra.mxu0 0
        %517 = vmatprep.subr.bf16.mxu0 0
        %518 = vmatpush1.bf16.msra.mxu0 0
        %519 = vmatprep.subr.bf16.mxu0 0
        %520 = vmatpush1.bf16.msra.mxu0 0
        %521 = vmatprep.subr.bf16.mxu0 0
        %522 = vmatpush1.bf16.msra.mxu0 0
        %523 = vmatprep.subr.bf16.mxu0 0
        %524 = vmatpush1.bf16.msra.mxu0 0
        %525 = vmatprep.subr.bf16.mxu0 0
        %526 = vmatpush1.bf16.msra.mxu0 0
        %527 = vmatprep.subr.bf16.mxu0 0
        %528 = vmatpush1.bf16.msra.mxu0 0
        %529 = vmatprep.subr.bf16.mxu0 0
        %530 = vmatpush1.bf16.msra.mxu0 %v513
        %531 = vmatprep.subr.bf16.mxu0 0
        %532 = vmatpush2.bf16.msra.mxu0 0
        %533 = vmatprep.subr.bf16.mxu0 0
        %534 = vmatpush2.bf16.msra.mxu0 0
        %535 = vmatprep.subr.bf16.mxu0 0
        %536 = vmatpush2.bf16.msra.mxu0 0
        %537 = vmatprep.subr.bf16.mxu0 0
        %538 = vmatpush2.bf16.msra.mxu0 0
        %539 = vmatprep.subr.bf16.mxu0 0
        %540 = vmatpush2.bf16.msra.mxu0 0
        %541 = vmatprep.subr.bf16.mxu0 0
        %542 = vmatpush2.bf16.msra.mxu0 0
        %543 = vmatprep.subr.bf16.mxu0 0
        %544 = vmatpush2.bf16.msra.mxu0 0
        %545 = vmatprep.subr.bf16.mxu0 0
        %546 = vmatpush2.bf16.msra.mxu0 0
        %547 = vmatprep.mubr.bf16.mxu0 0
        %548 = vmatmul.mubr.bf16.gmra.mxu0 %v509
        %v549 = vpop.f32.mrf.mxu0
        %v550 = vadd.f32 0.0, %v549
        %v551 = vpop.f32.mrf.mxu0
        %v552 = vpop.f32.mrf.mxu0
        %v553 = vpop.f32.mrf.mxu0
        %554 = vdwg.mxu0
        %v555 = vpack.c.bf16 %v550, %v550
        %vm556 = vcmask 60416
        %557 = vst.msk [vmem:[#allocation4] sm:$0xf] %vm556, %v555
        %v558 = vld [vmem:[#allocation3] sm:$0xf]
        %v559 = vld [vmem:[#allocation2] sm:$0xf]
        %v561 = vunpack.c.l.b16 %v558
        %v562 = vpack.c.b16 %v561, %v561
        %563 = vrot.lane.b32.xlu0 %v562, 120
        %v564 = vpop.permute.xlu0 %563
        %v566 = vunpack.c.l.b16 %v559
        %v567 = vpack.c.b16 %v566, %v566
        %568 = vrot.lane.b32.xlu0 %v567, 120
        %v569 = vpop.permute.xlu0 %568
        %v571 = vsel %vm444, %v564, 0
        %v574 = vsel %vm444, %v569, 0
        %576 = vmatprep.subr.bf16.mxu0 0
        %577 = vmatpush1.bf16.xpose.msra.mxu0 0
        %578 = vmatprep.subr.bf16.mxu0 0
        %579 = vmatpush1.bf16.xpose.msra.mxu0 0
        %580 = vmatprep.subr.bf16.mxu0 0
        %581 = vmatpush1.bf16.xpose.msra.mxu0 0
        %582 = vmatprep.subr.bf16.mxu0 0
        %583 = vmatpush1.bf16.xpose.msra.mxu0 0
        %584 = vmatprep.subr.bf16.mxu0 0
        %585 = vmatpush1.bf16.xpose.msra.mxu0 0
        %586 = vmatprep.subr.bf16.mxu0 0
        %587 = vmatpush1.bf16.xpose.msra.mxu0 0
        %588 = vmatprep.subr.bf16.mxu0 0
        %589 = vmatpush1.bf16.xpose.msra.mxu0 0
        %590 = vmatprep.subr.bf16.mxu0 0
        %591 = vmatpush1.bf16.xpose.msra.mxu0 %v574
        %592 = vmatprep.subr.bf16.mxu0 0
        %593 = vmatpush2.bf16.xpose.msra.mxu0 0
        %594 = vmatprep.subr.bf16.mxu0 0
        %595 = vmatpush2.bf16.xpose.msra.mxu0 0
        %596 = vmatprep.subr.bf16.mxu0 0
        %597 = vmatpush2.bf16.xpose.msra.mxu0 0
        %598 = vmatprep.subr.bf16.mxu0 0
        %599 = vmatpush2.bf16.xpose.msra.mxu0 0
        %600 = vmatprep.subr.bf16.mxu0 0
        %601 = vmatpush2.bf16.xpose.msra.mxu0 0
        %602 = vmatprep.subr.bf16.mxu0 0
        %603 = vmatpush2.bf16.xpose.msra.mxu0 0
        %604 = vmatprep.subr.bf16.mxu0 0
        %605 = vmatpush2.bf16.xpose.msra.mxu0 0
        %606 = vmatprep.subr.bf16.mxu0 0
        %607 = vmatpush2.bf16.xpose.msra.mxu0 0
        %608 = vmatprep.mubr.bf16.mxu0 0
        %609 = vmatmul.mubr.bf16.gmra.mxu0 %v571
        %v610 = vpop.f32.mrf.mxu0
        %v611 = vadd.f32 0.0, %v610
        %v612 = vpop.f32.mrf.mxu0
        %v613 = vpop.f32.mrf.mxu0
        %v614 = vpop.f32.mrf.mxu0
        %615 = vdwg.mxu0
        %v616 = vsel %vm444, %v611, -inf
        %617 = vmax.xlane.f32.xlu0 %v616
        %v618 = vpop.xlane.xlu0 %617
        %v619 = vsub.f32 %v611, %v618
        %v620 = vmul.f32 %v619, 1.442695
        %v621 = vpow.pop %v620
        %v622 = vsel %vm444, %v621, 0.0
        %623 = vadd.xlane.f32.xlu0 %v622
        %v624 = vpop.xlane.xlu0 %623
        %v625 = vrcp.pop %v624
        %v626 = vmul.f32 %v621, %v625
        %v627 = vpack.c.bf16 %v626, %v626
        %628 = vrot.lane.b32.xlu0 %v567, 88
        %v629 = vpop.permute.xlu0 %628
        %v631 = vsel %vm444, %v627, 0
        %v634 = vsel %vm511, %v629, 0
        %636 = vmatprep.subr.bf16.mxu0 0
        %637 = vmatpush1.bf16.msra.mxu0 0
        %638 = vmatprep.subr.bf16.mxu0 0
        %639 = vmatpush1.bf16.msra.mxu0 0
        %640 = vmatprep.subr.bf16.mxu0 0
        %641 = vmatpush1.bf16.msra.mxu0 0
        %642 = vmatprep.subr.bf16.mxu0 0
        %643 = vmatpush1.bf16.msra.mxu0 0
        %644 = vmatprep.subr.bf16.mxu0 0
        %645 = vmatpush1.bf16.msra.mxu0 0
        %646 = vmatprep.subr.bf16.mxu0 0
        %647 = vmatpush1.bf16.msra.mxu0 0
        %648 = vmatprep.subr.bf16.mxu0 0
        %649 = vmatpush1.bf16.msra.mxu0 0
        %650 = vmatprep.subr.bf16.mxu0 0
        %651 = vmatpush1.bf16.msra.mxu0 %v634
        %652 = vmatprep.subr.bf16.mxu0 0
        %653 = vmatpush2.bf16.msra.mxu0 0
        %654 = vmatprep.subr.bf16.mxu0 0
        %655 = vmatpush2.bf16.msra.mxu0 0
        %656 = vmatprep.subr.bf16.mxu0 0
        %657 = vmatpush2.bf16.msra.mxu0 0
        %658 = vmatprep.subr.bf16.mxu0 0
        %659 = vmatpush2.bf16.msra.mxu0 0
        %660 = vmatprep.subr.bf16.mxu0 0
        %661 = vmatpush2.bf16.msra.mxu0 0
        %662 = vmatprep.subr.bf16.mxu0 0
        %663 = vmatpush2.bf16.msra.mxu0 0
        %664 = vmatprep.subr.bf16.mxu0 0
        %665 = vmatpush2.bf16.msra.mxu0 0
        %666 = vmatprep.subr.bf16.mxu0 0
        %667 = vmatpush2.bf16.msra.mxu0 0
        %668 = vmatprep.mubr.bf16.mxu0 0
        %669 = vmatmul.mubr.bf16.gmra.mxu0 %v631
        %v670 = vpop.f32.mrf.mxu0
        %v671 = vadd.f32 0.0, %v670
        %v672 = vpop.f32.mrf.mxu0
        %v673 = vpop.f32.mrf.mxu0
        %v674 = vpop.f32.mrf.mxu0
        %675 = vdwg.mxu0
        %v676 = vpack.c.bf16 %v671, %v671
        %v678 = vunpack.c.l.b16 %v676
        %v679 = vpack.c.b16 %v678, %v678
        %680 = vrot.lane.b32.xlu0 %v679, 8
        %v681 = vpop.permute.xlu0 %680
        %vm683 = vcmask 126016
        %684 = vst.msk [vmem:[#allocation4] sm:$0xf] %vm683, %v681
        %v685 = vld [vmem:[#allocation3] sm:$0xf]
        %v686 = vld [vmem:[#allocation2] sm:$0xf]
        %v688 = vunpack.c.l.b16 %v685
        %v689 = vpack.c.b16 %v688, %v688
        %690 = vrot.lane.b32.xlu0 %v689, 112
        %v691 = vpop.permute.xlu0 %690
        %v693 = vunpack.c.l.b16 %v686
        %v694 = vpack.c.b16 %v693, %v693
        %695 = vrot.lane.b32.xlu0 %v694, 112
        %v696 = vpop.permute.xlu0 %695
        %v698 = vsel %vm444, %v691, 0
        %v701 = vsel %vm444, %v696, 0
        %703 = vmatprep.subr.bf16.mxu0 0
        %704 = vmatpush1.bf16.xpose.msra.mxu0 0
        %705 = vmatprep.subr.bf16.mxu0 0
        %706 = vmatpush1.bf16.xpose.msra.mxu0 0
        %707 = vmatprep.subr.bf16.mxu0 0
        %708 = vmatpush1.bf16.xpose.msra.mxu0 0
        %709 = vmatprep.subr.bf16.mxu0 0
        %710 = vmatpush1.bf16.xpose.msra.mxu0 0
        %711 = vmatprep.subr.bf16.mxu0 0
        %712 = vmatpush1.bf16.xpose.msra.mxu0 0
        %713 = vmatprep.subr.bf16.mxu0 0
        %714 = vmatpush1.bf16.xpose.msra.mxu0 0
        %715 = vmatprep.subr.bf16.mxu0 0
        %716 = vmatpush1.bf16.xpose.msra.mxu0 0
        %717 = vmatprep.subr.bf16.mxu0 0
        %718 = vmatpush1.bf16.xpose.msra.mxu0 %v701
        %719 = vmatprep.subr.bf16.mxu0 0
        %720 = vmatpush2.bf16.xpose.msra.mxu0 0
        %721 = vmatprep.subr.bf16.mxu0 0
        %722 = vmatpush2.bf16.xpose.msra.mxu0 0
        %723 = vmatprep.subr.bf16.mxu0 0
        %724 = vmatpush2.bf16.xpose.msra.mxu0 0
        %725 = vmatprep.subr.bf16.mxu0 0
        %726 = vmatpush2.bf16.xpose.msra.mxu0 0
        %727 = vmatprep.subr.bf16.mxu0 0
        %728 = vmatpush2.bf16.xpose.msra.mxu0 0
        %729 = vmatprep.subr.bf16.mxu0 0
        %730 = vmatpush2.bf16.xpose.msra.mxu0 0
        %731 = vmatprep.subr.bf16.mxu0 0
        %732 = vmatpush2.bf16.xpose.msra.mxu0 0
        %733 = vmatprep.subr.bf16.mxu0 0
        %734 = vmatpush2.bf16.xpose.msra.mxu0 0
        %735 = vmatprep.mubr.bf16.mxu0 0
        %736 = vmatmul.mubr.bf16.gmra.mxu0 %v698
        %v737 = vpop.f32.mrf.mxu0
        %v738 = vadd.f32 0.0, %v737
        %v739 = vpop.f32.mrf.mxu0
        %v740 = vpop.f32.mrf.mxu0
        %v741 = vpop.f32.mrf.mxu0
        %742 = vdwg.mxu0
        %v743 = vsel %vm444, %v738, -inf
        %744 = vmax.xlane.f32.xlu0 %v743
        %v745 = vpop.xlane.xlu0 %744
        %v746 = vsub.f32 %v738, %v745
        %v747 = vmul.f32 %v746, 1.442695
        %v748 = vpow.pop %v747
        %v749 = vsel %vm444, %v748, 0.0
        %750 = vadd.xlane.f32.xlu0 %v749
        %v751 = vpop.xlane.xlu0 %750
        %v752 = vrcp.pop %v751
        %v753 = vmul.f32 %v748, %v752
        %v754 = vpack.c.bf16 %v753, %v753
        %755 = vrot.lane.b32.xlu0 %v694, 80
        %v756 = vpop.permute.xlu0 %755
        %v758 = vsel %vm444, %v754, 0
        %v761 = vsel %vm511, %v756, 0
        %763 = vmatprep.subr.bf16.mxu0 0
        %764 = vmatpush1.bf16.msra.mxu0 0
        %765 = vmatprep.subr.bf16.mxu0 0
        %766 = vmatpush1.bf16.msra.mxu0 0
        %767 = vmatprep.subr.bf16.mxu0 0
        %768 = vmatpush1.bf16.msra.mxu0 0
        %769 = vmatprep.subr.bf16.mxu0 0
        %770 = vmatpush1.bf16.msra.mxu0 0
        %771 = vmatprep.subr.bf16.mxu0 0
        %772 = vmatpush1.bf16.msra.mxu0 0
        %773 = vmatprep.subr.bf16.mxu0 0
        %774 = vmatpush1.bf16.msra.mxu0 0
        %775 = vmatprep.subr.bf16.mxu0 0
        %776 = vmatpush1.bf16.msra.mxu0 0
        %777 = vmatprep.subr.bf16.mxu0 0
        %778 = vmatpush1.bf16.msra.mxu0 %v761
        %779 = vmatprep.subr.bf16.mxu0 0
        %780 = vmatpush2.bf16.msra.mxu0 0
        %781 = vmatprep.subr.bf16.mxu0 0
        %782 = vmatpush2.bf16.msra.mxu0 0
        %783 = vmatprep.subr.bf16.mxu0 0
        %784 = vmatpush2.bf16.msra.mxu0 0
        %785 = vmatprep.subr.bf16.mxu0 0
        %786 = vmatpush2.bf16.msra.mxu0 0
        %787 = vmatprep.subr.bf16.mxu0 0
        %788 = vmatpush2.bf16.msra.mxu0 0
        %789 = vmatprep.subr.bf16.mxu0 0
        %790 = vmatpush2.bf16.msra.mxu0 0
        %791 = vmatprep.subr.bf16.mxu0 0
        %792 = vmatpush2.bf16.msra.mxu0 0
        %793 = vmatprep.subr.bf16.mxu0 0
        %794 = vmatpush2.bf16.msra.mxu0 0
        %795 = vmatprep.mubr.bf16.mxu0 0
        %796 = vmatmul.mubr.bf16.gmra.mxu0 %v758
        %v797 = vpop.f32.mrf.mxu0
        %v798 = vadd.f32 0.0, %v797
        %v799 = vpop.f32.mrf.mxu0
        %v800 = vpop.f32.mrf.mxu0
        %v801 = vpop.f32.mrf.mxu0
        %802 = vdwg.mxu0
        %v803 = vpack.c.bf16 %v798, %v798
        %v805 = vunpack.c.l.b16 %v803
        %v806 = vpack.c.b16 %v805, %v805
        %807 = vrot.lane.b32.xlu0 %v806, 16
        %v808 = vpop.permute.xlu0 %807
        %vm810 = vcmask 191616
        %811 = vst.msk [vmem:[#allocation4] sm:$0xf] %vm810, %v808
        %v812 = vld [vmem:[#allocation3] sm:$0xf]
        %v813 = vld [vmem:[#allocation2] sm:$0xf]
        %v815 = vunpack.c.l.b16 %v812
        %v816 = vpack.c.b16 %v815, %v815
        %817 = vrot.lane.b32.xlu0 %v816, 104
        %v818 = vpop.permute.xlu0 %817
        %v820 = vunpack.c.l.b16 %v813
        %v821 = vpack.c.b16 %v820, %v820
        %822 = vrot.lane.b32.xlu0 %v821, 104
        %v823 = vpop.permute.xlu0 %822
        %v825 = vsel %vm444, %v818, 0
        %v828 = vsel %vm444, %v823, 0
        %830 = vmatprep.subr.bf16.mxu0 0
        %831 = vmatpush1.bf16.xpose.msra.mxu0 0
        %832 = vmatprep.subr.bf16.mxu0 0
        %833 = vmatpush1.bf16.xpose.msra.mxu0 0
        %834 = vmatprep.subr.bf16.mxu0 0
        %835 = vmatpush1.bf16.xpose.msra.mxu0 0
        %836 = vmatprep.subr.bf16.mxu0 0
        %837 = vmatpush1.bf16.xpose.msra.mxu0 0
        %838 = vmatprep.subr.bf16.mxu0 0
        %839 = vmatpush1.bf16.xpose.msra.mxu0 0
        %840 = vmatprep.subr.bf16.mxu0 0
        %841 = vmatpush1.bf16.xpose.msra.mxu0 0
        %842 = vmatprep.subr.bf16.mxu0 0
        %843 = vmatpush1.bf16.xpose.msra.mxu0 0
        %844 = vmatprep.subr.bf16.mxu0 0
        %845 = vmatpush1.bf16.xpose.msra.mxu0 %v828
        %846 = vmatprep.subr.bf16.mxu0 0
        %847 = vmatpush2.bf16.xpose.msra.mxu0 0
        %848 = vmatprep.subr.bf16.mxu0 0
        %849 = vmatpush2.bf16.xpose.msra.mxu0 0
        %850 = vmatprep.subr.bf16.mxu0 0
        %851 = vmatpush2.bf16.xpose.msra.mxu0 0
        %852 = vmatprep.subr.bf16.mxu0 0
        %853 = vmatpush2.bf16.xpose.msra.mxu0 0
        %854 = vmatprep.subr.bf16.mxu0 0
        %855 = vmatpush2.bf16.xpose.msra.mxu0 0
        %856 = vmatprep.subr.bf16.mxu0 0
        %857 = vmatpush2.bf16.xpose.msra.mxu0 0
        %858 = vmatprep.subr.bf16.mxu0 0
        %859 = vmatpush2.bf16.xpose.msra.mxu0 0
        %860 = vmatprep.subr.bf16.mxu0 0
        %861 = vmatpush2.bf16.xpose.msra.mxu0 0
        %862 = vmatprep.mubr.bf16.mxu0 0
        %863 = vmatmul.mubr.bf16.gmra.mxu0 %v825
        %v864 = vpop.f32.mrf.mxu0
        %v865 = vadd.f32 0.0, %v864
        %v866 = vpop.f32.mrf.mxu0
        %v867 = vpop.f32.mrf.mxu0
        %v868 = vpop.f32.mrf.mxu0
        %869 = vdwg.mxu0
        %v870 = vsel %vm444, %v865, -inf
        %871 = vmax.xlane.f32.xlu0 %v870
        %v872 = vpop.xlane.xlu0 %871
        %v873 = vsub.f32 %v865, %v872
        %v874 = vmul.f32 %v873, 1.442695
        %v875 = vpow.pop %v874
        %v876 = vsel %vm444, %v875, 0.0
        %877 = vadd.xlane.f32.xlu0 %v876
        %v878 = vpop.xlane.xlu0 %877
        %v879 = vrcp.pop %v878
        %v880 = vmul.f32 %v875, %v879
        %v881 = vpack.c.bf16 %v880, %v880
        %882 = vrot.lane.b32.xlu0 %v821, 72
        %v883 = vpop.permute.xlu0 %882
        %v885 = vsel %vm444, %v881, 0
        %v888 = vsel %vm511, %v883, 0
        %890 = vmatprep.subr.bf16.mxu0 0
        %891 = vmatpush1.bf16.msra.mxu0 0
        %892 = vmatprep.subr.bf16.mxu0 0
        %893 = vmatpush1.bf16.msra.mxu0 0
        %894 = vmatprep.subr.bf16.mxu0 0
        %895 = vmatpush1.bf16.msra.mxu0 0
        %896 = vmatprep.subr.bf16.mxu0 0
        %897 = vmatpush1.bf16.msra.mxu0 0
        %898 = vmatprep.subr.bf16.mxu0 0
        %899 = vmatpush1.bf16.msra.mxu0 0
        %900 = vmatprep.subr.bf16.mxu0 0
        %901 = vmatpush1.bf16.msra.mxu0 0
        %902 = vmatprep.subr.bf16.mxu0 0
        %903 = vmatpush1.bf16.msra.mxu0 0
        %904 = vmatprep.subr.bf16.mxu0 0
        %905 = vmatpush1.bf16.msra.mxu0 %v888
        %906 = vmatprep.subr.bf16.mxu0 0
        %907 = vmatpush2.bf16.msra.mxu0 0
        %908 = vmatprep.subr.bf16.mxu0 0
        %909 = vmatpush2.bf16.msra.mxu0 0
        %910 = vmatprep.subr.bf16.mxu0 0
        %911 = vmatpush2.bf16.msra.mxu0 0
        %912 = vmatprep.subr.bf16.mxu0 0
        %913 = vmatpush2.bf16.msra.mxu0 0
        %914 = vmatprep.subr.bf16.mxu0 0
        %915 = vmatpush2.bf16.msra.mxu0 0
        %916 = vmatprep.subr.bf16.mxu0 0
        %917 = vmatpush2.bf16.msra.mxu0 0
        %918 = vmatprep.subr.bf16.mxu0 0
        %919 = vmatpush2.bf16.msra.mxu0 0
        %920 = vmatprep.subr.bf16.mxu0 0
        %921 = vmatpush2.bf16.msra.mxu0 0
        %922 = vmatprep.mubr.bf16.mxu0 0
        %923 = vmatmul.mubr.bf16.gmra.mxu0 %v885
        %v924 = vpop.f32.mrf.mxu0
        %v925 = vadd.f32 0.0, %v924
        %v926 = vpop.f32.mrf.mxu0
        %v927 = vpop.f32.mrf.mxu0
        %v928 = vpop.f32.mrf.mxu0
        %929 = vdwg.mxu0
        %v930 = vpack.c.bf16 %v925, %v925
        %v932 = vunpack.c.l.b16 %v930
        %v933 = vpack.c.b16 %v932, %v932
        %934 = vrot.lane.b32.xlu0 %v933, 24
        %v935 = vpop.permute.xlu0 %934
        %vm937 = vcmask 257216
        %938 = vst.msk [vmem:[#allocation4] sm:$0xf] %vm937, %v935
        %v939 = vld [vmem:[#allocation4] sm:$0xf]
        %v940 = vld [vmem:[#allocation10] sm:$0xf]
        %v941 = vld [vmem:[#allocation10 + $0x4] sm:$0xf]
        %v942 = vld [vmem:[#allocation10 + $0x8] sm:$0xf]
        %v943 = vld [vmem:[#allocation10 + $0xc] sm:$0xf]
        %v944 = vld [vmem:[%s4] sm:$0x1]
        %v946 = vlaneseq
        %v947 = vshrl.u32 %v946, 7
        %v948 = vsub.s32 0, %v947
        %v949 = vrot.slane %v944, %v948
        %v955 = vunpack.c.l.b16 %v940
        %v956 = vunpack.c.l.b16 %v941
        %v957 = vunpack.c.l.b16 %v942
        %v958 = vunpack.c.l.b16 %v943
        %v959 = vpack.c.b16 %v956, %v955
        %v960 = vpack.c.b16 %v958, %v957
        %v964 = vsel %vm394, %v939, 0
        %966 = vmatprep.subr.bf16.mxu0 0
        %967 = vmatpush1.bf16.msra.mxu0 0
        %968 = vmatprep.subr.bf16.mxu0 0
        %969 = vmatpush1.bf16.msra.mxu0 0
        %970 = vmatprep.subr.bf16.mxu0 0
        %971 = vmatpush1.bf16.msra.mxu0 0
        %972 = vmatprep.subr.bf16.mxu0 0
        %973 = vmatpush1.bf16.msra.mxu0 0
        %974 = vmatprep.subr.bf16.mxu0 0
        %975 = vmatpush1.bf16.msra.mxu0 0
        %976 = vmatprep.subr.bf16.mxu0 0
        %977 = vmatpush1.bf16.msra.mxu0 0
        %978 = vmatprep.subr.bf16.mxu0 0
        %979 = vmatpush1.bf16.msra.mxu0 %v960
        %980 = vmatprep.subr.bf16.mxu0 0
        %981 = vmatpush1.bf16.msra.mxu0 %v959
        %982 = vmatprep.subr.bf16.mxu0 0
        %983 = vmatpush2.bf16.msra.mxu0 0
        %984 = vmatprep.subr.bf16.mxu0 0
        %985 = vmatpush2.bf16.msra.mxu0 0
        %986 = vmatprep.subr.bf16.mxu0 0
        %987 = vmatpush2.bf16.msra.mxu0 0
        %988 = vmatprep.subr.bf16.mxu0 0
        %989 = vmatpush2.bf16.msra.mxu0 0
        %990 = vmatprep.subr.bf16.mxu0 0
        %991 = vmatpush2.bf16.msra.mxu0 0
        %992 = vmatprep.subr.bf16.mxu0 0
        %993 = vmatpush2.bf16.msra.mxu0 0
        %994 = vmatprep.subr.bf16.mxu0 0
        %995 = vmatpush2.bf16.msra.mxu0 0
        %996 = vmatprep.subr.bf16.mxu0 0
        %997 = vmatpush2.bf16.msra.mxu0 0
        %998 = vmatprep.mubr.bf16.mxu0 0
        %999 = vmatmul.mubr.bf16.gmra.mxu0 %v964
        %v1000 = vpop.f32.mrf.mxu0
        %v1001 = vadd.f32 %v949, %v1000
        %v1002 = vpop.f32.mrf.mxu0
        %v1003 = vpop.f32.mrf.mxu0
        %v1004 = vpop.f32.mrf.mxu0
        %1005 = vdwg.mxu0
        %1006 = vst.msk [vmem:[%s282] sm:$0xff] %vm394, %v1001
        %s1007 = sand.u32 %s155, 1
        %s1008 = scalar_lea.sflag [#allocation7], %s1007
        %s1009 = sand.u32 %s155, 1
        %s1010 = smul.addr %s1009, 8
        %s1011 = scalar_lea.vmem [#allocation11], %s1010
        // Predicated region
        $region57: #{tpu_custom_call.1} parent=39 // pred_check
          %p1012 = pneg %p165
        $region58: #{tpu_custom_call.1} parent=39 // pred_check_branch
          %1014 = sbr.rel (%p1012) target = $region60
        $region59: #{tpu_custom_call.1} parent=39 // pred_region
          %s1016 = ssub.s32 128, 128
          %1017 = vsyncadd %s1008, %s1016
          %s1018 = sadd.s32 %s28, %s27
          %s1019 = smul.addr %s1018, 128
          %s1020 = scalar_lea.hbm %s5, %s1019
          %s1022 = sshll.u32 %s1011, 4
          %s1023 = int_to_ptr.vmem [resolvable:$true] %s1022
          %1025 = dma.vmem_to_hbm [thread:$0]  %s1023, 128, %s1020, %s1008
        $region60: #{tpu_custom_call.1} parent=39 // pred_fallthru
          _
      $region40: #{tpu_custom_call.1} parent=5 // pred_fallthru
        _
      %p1026 = scmp.le.s32.totalorder 2, %s18
      // Predicated region
      $region61: #{tpu_custom_call.1} parent=5 // pred_check
        %p1027 = pneg %p1026
      $region62: #{tpu_custom_call.1} parent=5 // pred_check_branch
        %1029 = sbr.rel (%p1027) target = $region64
      $region63: #{tpu_custom_call.1} parent=5 // pred_region
        %s1030 = ssub.s32 %s18, 2
        // Predicated region
        $region65: #{tpu_custom_call.1} parent=63 // pred_check
          %p1031 = pneg %p171
        $region66: #{tpu_custom_call.1} parent=63 // pred_check_branch
          %1033 = sbr.rel (%p1031) target = $region68
        $region67: #{tpu_custom_call.1} parent=63 // pred_region
          %s1034 = sand.u32 %s156, 1
          %s1035 = scalar_lea.sflag [#allocation7], %s1034
          %s1036 = sand.u32 %s156, 1
          %s1037 = smul.addr %s1036, 8
          %s1038 = scalar_lea.vmem [#allocation11], %s1037
          %1039 = dma.done %s1035, 128
        $region68: #{tpu_custom_call.1} parent=63 // pred_fallthru
          _
      $region64: #{tpu_custom_call.1} parent=5 // pred_fallthru
        _
    $region6: #{tpu_custom_call.1} parent=1 // loop_footer
      %s22 = sadd.s32 1, %s18
    $region7: #{tpu_custom_call.1} parent=1 // loop_footer_branch
      %17 = sbr.rel target = $region3
    $region8: #{tpu_custom_call.1} parent=1 // loop_exit
      _
    %1040 = vsyncpa [#allocation6], 1
    %s1041 = scalar_lea.sflag [#allocation6], 1
    %1042 = vsyncpa %s1041, 1
    %1043 = vsyncpa [#allocation9], 1
    %1044 = vsyncpa [#allocation7], 1
    %s1045 = scalar_lea.sflag [#allocation7], 1
    %1046 = vsyncpa %s1045, 1

</llo_original>
